<compile_context>
chip_gen: v6e
topology: v6e:2x2x1
jax: 0.10.0
libtpu: 0.0.40
codegen_flags: <defaults>
</compile_context>

<pallas_src>
import functools

import jax
import jax.numpy as jnp
from jax.experimental import pallas as pl
from jax.experimental.pallas import tpu as pltpu


_TILE_BYTES = 2 * 1024 * 1024  # ~2 MiB per block; ~8 MiB double-buffered (in+out)
                               # fits every generation's scoped-VMEM default.


# ----------------------------- helpers ------------------------------------- #

def _round_up(x, m):
    return ((x + m - 1) // m) * m


def _pick_rows_tile(n, target_rows):
    """Tile size (multiple of 8) <= target; split in two if it would give a
    single grid step (megacore on v7x), when there is enough data."""
    t = min(target_rows, _round_up(n, 8))
    if n > 16 and n <= t:
        t = _round_up(-(-n // 2), 8)
    return t


# ----------------------------- kernels ------------------------------------- #

def _ln_last_dense_kernel(x_ref, w_ref, b_ref, g_ref, o_ref, *, eps, C):
    # Lane-dense channels_last: x_ref is (TM, 128) where each 128-lane row holds
    # G = 128 // C independent groups of C channels. g_ref is a (128, 128)
    # block-diagonal ones matrix -> x @ g broadcasts each group's sum to every
    # element of that group (runs on the otherwise-idle MXU).
    x = x_ref[...].astype(jnp.float32)                       # (TM, 128)
    gmat = g_ref[...]                                        # (128, 128) f32
    inv_c = 1.0 / C
    mean = jnp.dot(x, gmat, preferred_element_type=jnp.float32) * inv_c
    xc = x - mean
    var = jnp.dot(xc * xc, gmat, preferred_element_type=jnp.float32) * inv_c
    inv = jax.lax.rsqrt(var + eps)
    w = w_ref[...].astype(jnp.float32)                       # (1, 128) = tile(weight, G)
    b = b_ref[...].astype(jnp.float32)                       # (1, 128)
    o_ref[...] = (xc * inv * w + b).astype(o_ref.dtype)


def _ln_last_rows_kernel(x_ref, w_ref, b_ref, o_ref, *, eps):
    # Generic channels_last fallback: x_ref is (TN, C); normalize each row over C.
    x = x_ref[...].astype(jnp.float32)
    mean = jnp.mean(x, axis=-1, keepdims=True)
    xc = x - mean
    var = jnp.mean(xc * xc, axis=-1, keepdims=True)
    inv = jax.lax.rsqrt(var + eps)
    w = w_ref[...].astype(jnp.float32)                       # (1, C)
    b = b_ref[...].astype(jnp.float32)                       # (1, C)
    o_ref[...] = (xc * inv * w + b).astype(o_ref.dtype)


def _ln_channels_first_kernel(x_ref, w_ref, b_ref, o_ref, *, eps):
    # x_ref: (TB, C, TS) tile; normalize each (batch, spatial) column over C.
    x = x_ref[...].astype(jnp.float32)
    mean = jnp.mean(x, axis=1, keepdims=True)
    xc = x - mean
    var = jnp.mean(xc * xc, axis=1, keepdims=True)
    inv = jax.lax.rsqrt(var + eps)
    w = w_ref[...].astype(jnp.float32)                       # (1, C, 1)
    b = b_ref[...].astype(jnp.float32)                       # (1, C, 1)
    o_ref[...] = (xc * inv * w + b).astype(o_ref.dtype)


# ----------------------------- channels_last ------------------------------- #

def _ln_last_lane_dense(x2, weight, bias, eps, tile_bytes):
    """x2: (N, C) with 128 % C == 0. Lane-dense (M, 128) view + MXU group sums."""
    N, C = x2.shape
    G = 128 // C
    M = -(-N // G)                                   # 128-lane rows needed
    TM = _pick_rows_tile(M, max(8, (tile_bytes // (128 * 4)) // 8 * 8))
    M_pad = _round_up(M, TM)
    N_pad = M_pad * G
    if N_pad != N:
        x2 = jnp.pad(x2, ((0, N_pad - N), (0, 0)))
    xd = x2.reshape(M_pad, 128)

    lane = jnp.arange(128)
    grp = lane // C
    gmat = (grp[:, None] == grp[None, :]).astype(jnp.float32)   # block-diag ones
    w_row = jnp.tile(weight.astype(jnp.float32), G).reshape(1, 128)
    b_row = jnp.tile(bias.astype(jnp.float32), G).reshape(1, 128)

    out = pl.pallas_call(
        functools.partial(_ln_last_dense_kernel, eps=eps, C=C),
        out_shape=jax.ShapeDtypeStruct((M_pad, 128), x2.dtype),
        grid_spec=pltpu.PrefetchScalarGridSpec(
            num_scalar_prefetch=0,
            grid=(M_pad // TM,),
            in_specs=[
                pl.BlockSpec((TM, 128), lambda i: (i, 0)),
                pl.BlockSpec((1, 128), lambda i: (0, 0)),
                pl.BlockSpec((1, 128), lambda i: (0, 0)),
                pl.BlockSpec((128, 128), lambda i: (0, 0)),
            ],
            out_specs=pl.BlockSpec((TM, 128), lambda i: (i, 0)),
        ),
        compiler_params=pltpu.CompilerParams(
            dimension_semantics=("parallel",)),
    )(xd, w_row, b_row, gmat)
    return out.reshape(N_pad, C)[:N]


def _ln_last_rows(x2, weight, bias, eps, tile_bytes):
    """Generic (N, C) fallback (C >= 128 or 128 % C != 0)."""
    N, C = x2.shape
    TN = _pick_rows_tile(N, max(8, (tile_bytes // (C * 4)) // 8 * 8))
    N_pad = _round_up(N, TN)
    if N_pad != N:
        x2 = jnp.pad(x2, ((0, N_pad - N), (0, 0)))
    w2 = weight.reshape(1, C)
    b2 = bias.reshape(1, C)

    out = pl.pallas_call(
        functools.partial(_ln_last_rows_kernel, eps=eps),
        out_shape=jax.ShapeDtypeStruct((N_pad, C), x2.dtype),
        grid_spec=pltpu.PrefetchScalarGridSpec(
            num_scalar_prefetch=0,
            grid=(N_pad // TN,),
            in_specs=[
                pl.BlockSpec((TN, C), lambda i: (i, 0)),
                pl.BlockSpec((1, C), lambda i: (0, 0)),
                pl.BlockSpec((1, C), lambda i: (0, 0)),
            ],
            out_specs=pl.BlockSpec((TN, C), lambda i: (i, 0)),
        ),
        compiler_params=pltpu.CompilerParams(
            dimension_semantics=("parallel",)),
    )(x2, w2, b2)
    return out[:N]


def layernorm_channels_last(x, weight, bias, eps=1e-6, tile_bytes=_TILE_BYTES):
    """x: (..., C). weight/bias: (C,). Matches F.layer_norm over the last dim."""
    orig_shape = x.shape
    C = orig_shape[-1]
    x2 = x.reshape(-1, C)
    if C < 128 and 128 % C == 0:
        out = _ln_last_lane_dense(x2, weight, bias, eps, tile_bytes)
    else:
        out = _ln_last_rows(x2, weight, bias, eps, tile_bytes)
    return out.reshape(orig_shape)


# ----------------------------- channels_first ------------------------------ #

def layernorm_channels_first(x, weight, bias, eps=1e-6, tile_bytes=_TILE_BYTES):
    """x: (B, C, *spatial). weight/bias: (C,). Normalizes over the channel dim."""
    B, C = x.shape[0], x.shape[1]
    spatial = x.shape[2:]
    S = 1
    for d in spatial:
        S *= d
    x3 = x.reshape(B, C, S)

    # Columns-per-block budget (~tile_bytes), lane-aligned to 128.
    cols_budget = max(128, (tile_bytes // (4 * C)) // 128 * 128)
    S_pad128 = _round_up(S, 128)
    TS = min(cols_budget, S_pad128)
    S_pad = _round_up(S, TS)
    ns = S_pad // TS

    # If one block already covers all of S, merge batches into the block
    # (but keep >= 2 grid steps when possible for v7x megacore).
    if ns == 1:
        tb_cap = max(1, tile_bytes // (4 * C * TS))
        TB = min(B, tb_cap)
        if B >= 2:
            TB = min(TB, -(-B // 2))
    else:
        TB = 1
    B_pad = _round_up(B, TB)

    if (B_pad, S_pad) != (B, S):
        x3 = jnp.pad(x3, ((0, B_pad - B), (0, 0), (0, S_pad - S)))

    w3 = weight.reshape(1, C, 1)
    b3 = bias.reshape(1, C, 1)

    out = pl.pallas_call(
        functools.partial(_ln_channels_first_kernel, eps=eps),
        out_shape=jax.ShapeDtypeStruct((B_pad, C, S_pad), x.dtype),
        grid_spec=pltpu.PrefetchScalarGridSpec(
            num_scalar_prefetch=0,
            grid=(B_pad // TB, ns),
            in_specs=[
                pl.BlockSpec((TB, C, TS), lambda b, s: (b, 0, s)),
                pl.BlockSpec((1, C, 1), lambda b, s: (0, 0, 0)),
                pl.BlockSpec((1, C, 1), lambda b, s: (0, 0, 0)),
            ],
            out_specs=pl.BlockSpec((TB, C, TS), lambda b, s: (b, 0, s)),
        ),
        compiler_params=pltpu.CompilerParams(
            dimension_semantics=("parallel", "parallel")),
    )(x3, w3, b3)
    out = out[:B, :, :S]
    return out.reshape((B, C) + spatial)


# ----------------------------- reference ----------------------------------- #

def _ref_channels_last(x, w, b, eps):
    x32 = x.astype(jnp.float32)
    u = x32.mean(-1, keepdims=True)
    s = ((x32 - u) ** 2).mean(-1, keepdims=True)
    return ((x32 - u) / jnp.sqrt(s + eps) * w + b).astype(x.dtype)


def _ref_channels_first(x, w, b, eps):
    x32 = x.astype(jnp.float32)
    u = x32.mean(1, keepdims=True)
    s = ((x32 - u) ** 2).mean(1, keepdims=True)
    y = (x32 - u) / jnp.sqrt(s + eps)
    bc = (slice(None),) + (None,) * (x.ndim - 2)
    return (w[bc] * y + b[bc]).astype(x.dtype)


# ----------------------------- main ----------------------------------------- #

if __name__ == "__main__":
    key = jax.random.PRNGKey(0)
    k1, k2, k3, k4, k5, k6 = jax.random.split(key, 6)

    eps = 1e-6
    C = 32
    weight = jax.random.normal(k3, (C,), jnp.float32)
    bias = jax.random.normal(k4, (C,), jnp.float32)

    # channels_last, C=32 -> lane-dense MXU path
    x_last = jax.random.normal(k1, (2, 4, 8, 8, C), jnp.float32)
    y_last = layernorm_channels_last(x_last, weight, bias, eps)
    jax.block_until_ready(y_last)
    ref_last = _ref_channels_last(x_last, weight, bias, eps)
    assert jnp.allclose(y_last, ref_last, atol=1e-4, rtol=1e-4), "channels_last C=32"

    # channels_last, C=48 with non-multiple row count -> generic fallback + padding
    C2 = 48
    w2 = jax.random.normal(k5, (C2,), jnp.float32)
    b2 = jax.random.normal(k6, (C2,), jnp.float32)
    x_last2 = jax.random.normal(k1, (2, 3, 5, 7, C2), jnp.float32)
    y_last2 = layernorm_channels_last(x_last2, w2, b2, eps)
    jax.block_until_ready(y_last2)
    ref_last2 = _ref_channels_last(x_last2, w2, b2, eps)
    assert jnp.allclose(y_last2, ref_last2, atol=1e-4, rtol=1e-4), "channels_last C=48"

    # channels_first, (B, C, D, H, W)
    x_first = jax.random.normal(k2, (2, C, 4, 8, 8), jnp.float32)
    y_first = layernorm_channels_first(x_first, weight, bias, eps)
    jax.block_until_ready(y_first)
    ref_first = _ref_channels_first(x_first, weight, bias, eps)
    assert jnp.allclose(y_first, ref_first, atol=1e-4, rtol=1e-4), "channels_first"

    # channels_first with odd spatial extent -> exercises lane padding
    x_first2 = jax.random.normal(k2, (2, C, 3, 5, 7), jnp.float32)
    y_first2 = layernorm_channels_first(x_first2, weight, bias, eps)
    jax.block_until_ready(y_first2)
    ref_first2 = _ref_channels_first(x_first2, weight, bias, eps)
    assert jnp.allclose(y_first2, ref_first2, atol=1e-4, rtol=1e-4), "channels_first odd"

    print("KERNEL_OK")
</pallas_src>

<mosaic_0001>
module attributes {stable_mosaic.version = 11 : i64} {
  func.func @_ln_last_dense_kernel(%arg0: i32, %arg1: memref<64x128xf32, #tpu.memory_space<vmem>>, %arg2: memref<1x128xf32, #tpu.memory_space<vmem>>, %arg3: memref<1x128xf32, #tpu.memory_space<vmem>>, %arg4: memref<128x128xf32, #tpu.memory_space<vmem>>, %arg5: memref<64x128xf32, #tpu.memory_space<vmem>>) attributes {dimension_semantics = [#tpu.dimension_semantics<parallel>], iteration_bounds = array<i64: 2>, scalar_prefetch = 0 : i64, scratch_operands = 0 : i64, tpu.core_type = #tpu.core_type<tc>, window_params = [{transform_indices = @transform_0, window_bounds = array<i64: 64, 128>}, {pipeline_mode = #tpu.pipeline_mode<synchronous>, transform_indices = @transform_1, window_bounds = array<i64: 1, 128>}, {pipeline_mode = #tpu.pipeline_mode<synchronous>, transform_indices = @transform_2, window_bounds = array<i64: 1, 128>}, {pipeline_mode = #tpu.pipeline_mode<synchronous>, transform_indices = @transform_3, window_bounds = array<i64: 128, 128>}, {transform_indices = @transform_4, window_bounds = array<i64: 64, 128>}]} {
    %c0 = arith.constant 0 : index
    %c0_0 = arith.constant 0 : index
    %0 = vector.load %arg1[%c0, %c0_0] : memref<64x128xf32, #tpu.memory_space<vmem>>, vector<64x128xf32>
    %c0_1 = arith.constant 0 : index
    %c0_2 = arith.constant 0 : index
    %1 = vector.load %arg4[%c0_1, %c0_2] : memref<128x128xf32, #tpu.memory_space<vmem>>, vector<128x128xf32>
    %cst = arith.constant dense<0.000000e+00> : vector<64x128xf32>
    %2 = tpu.matmul %0, %1, %cst {dimension_numbers = #tpu.dot_dimension_numbers<[1], [0], [0], [1], [0, 0, 1, 1], [], []>} : vector<64x128xf32>, vector<128x128xf32>, vector<64x128xf32> -> vector<64x128xf32>
    %cst_3 = arith.constant 3.125000e-02 : f32
    %3 = vector.broadcast %cst_3 : f32 to vector<64x128xf32>
    %4 = arith.mulf %2, %3 : vector<64x128xf32>
    %5 = arith.subf %0, %4 : vector<64x128xf32>
    %6 = arith.mulf %5, %5 : vector<64x128xf32>
    %cst_4 = arith.constant dense<0.000000e+00> : vector<64x128xf32>
    %7 = tpu.matmul %6, %1, %cst_4 {dimension_numbers = #tpu.dot_dimension_numbers<[1], [0], [0], [1], [0, 0, 1, 1], [], []>} : vector<64x128xf32>, vector<128x128xf32>, vector<64x128xf32> -> vector<64x128xf32>
    %cst_5 = arith.constant 3.125000e-02 : f32
    %8 = vector.broadcast %cst_5 : f32 to vector<64x128xf32>
    %9 = arith.mulf %7, %8 : vector<64x128xf32>
    %cst_6 = arith.constant 9.99999997E-7 : f32
    %10 = vector.broadcast %cst_6 : f32 to vector<64x128xf32>
    %11 = arith.addf %9, %10 : vector<64x128xf32>
    %12 = math.rsqrt %11 : vector<64x128xf32>
    %c0_7 = arith.constant 0 : index
    %c0_8 = arith.constant 0 : index
    %13 = vector.load %arg2[%c0_7, %c0_8] : memref<1x128xf32, #tpu.memory_space<vmem>>, vector<1x128xf32>
    %c0_9 = arith.constant 0 : index
    %c0_10 = arith.constant 0 : index
    %14 = vector.load %arg3[%c0_9, %c0_10] : memref<1x128xf32, #tpu.memory_space<vmem>>, vector<1x128xf32>
    %15 = arith.mulf %5, %12 : vector<64x128xf32>
    %16 = vector.broadcast %13 : vector<1x128xf32> to vector<64x128xf32>
    %17 = arith.mulf %15, %16 : vector<64x128xf32>
    %18 = vector.broadcast %14 : vector<1x128xf32> to vector<64x128xf32>
    %19 = arith.addf %17, %18 : vector<64x128xf32>
    %c0_11 = arith.constant 0 : index
    %c0_12 = arith.constant 0 : index
    %20 = vector.load %arg5[%c0_11, %c0_12] : memref<64x128xf32, #tpu.memory_space<vmem>>, vector<64x128xf32>
    tpu.vector_store %arg5[%c0_11, %c0_12], %19 {strides = array<i32>} : memref<64x128xf32, #tpu.memory_space<vmem>>, vector<64x128xf32>,
    return
  }
  func.func @transform_0(%arg0: i32) -> (i32, i32) {
    %c0_i32 = arith.constant 0 : i32
    %c0_i32_0 = arith.constant 0 : i32
    return %arg0, %c0_i32 : i32, i32
  }
  func.func @transform_1(%arg0: i32) -> (i32, i32) {
    %c0_i32 = arith.constant 0 : i32
    %c0_i32_0 = arith.constant 0 : i32
    %c0_i32_1 = arith.constant 0 : i32
    return %c0_i32, %c0_i32_0 : i32, i32
  }
  func.func @transform_2(%arg0: i32) -> (i32, i32) {
    %c0_i32 = arith.constant 0 : i32
    %c0_i32_0 = arith.constant 0 : i32
    %c0_i32_1 = arith.constant 0 : i32
    return %c0_i32, %c0_i32_0 : i32, i32
  }
  func.func @transform_3(%arg0: i32) -> (i32, i32) {
    %c0_i32 = arith.constant 0 : i32
    %c0_i32_0 = arith.constant 0 : i32
    %c0_i32_1 = arith.constant 0 : i32
    return %c0_i32, %c0_i32_0 : i32, i32
  }
  func.func @transform_4(%arg0: i32) -> (i32, i32) {
    %c0_i32 = arith.constant 0 : i32
    %c0_i32_0 = arith.constant 0 : i32
    return %arg0, %c0_i32 : i32, i32
  }
}

</mosaic_0001>

<llo_original>
// kernel: tpu_custom_call.1
$region0: #{tpu_custom_call.1}
  #allocation0 [shape = 'u32[]', space=smem, size = 0x4, offset = 0x4, fixed_abs, tag = 'smem constant byte address 0x4 - core index']
  #allocation1 [shape = 'u32[144,128]{1,0:T(1,128)}', space=vmem, size = 0x12000, scoped, tag = 'internal scratch']
  %s0 = inlined_call_operand.hbm [shape: f32[128,128], index: 0, kind: input, shape index: {}]
  %s1 = inlined_call_operand.vmem [shape: f32[1,128], index: 1, kind: input, shape index: {}]
  %s2 = inlined_call_operand.vmem [shape: f32[1,128], index: 2, kind: input, shape index: {}]
  %s3 = inlined_call_operand.hbm [shape: f32[128,128], index: 3, kind: input, shape index: {}]
  %s4 = inlined_call_operand.hbm [shape: f32[128,128], index: 4, kind: output, shape index: {}]
  %s5 = sld [smem:[#allocation0]]
  $region57: #{tpu_custom_call.1} parent=0
    _
  %s7 = ssub.s32 1, %s5
  %s8 = scalar_select 0, %s7, %s5
  $region1: #{tpu_custom_call.1} parent=0
    #allocation2 [shape = 'u8[65536]{0}', space=vmem, size = 0x10000, scoped, tag = 'input window, operand 0']
    #allocation3 [shape = 's32[2]{0}', space=sflag, size = 0x8, scoped, tag = 'scoped memory for tpu_custom_call.1']
    #allocation4 [shape = 's32[2]{0}', space=sflag, size = 0x8, scoped, tag = 'scoped memory for tpu_custom_call.1']
    #allocation5 [shape = 'u8[65536]{0}', space=vmem, size = 0x10000, scoped, tag = 'input window, operand 3, single buffered']
    #allocation6 [shape = 's32[1]{0}', space=sflag, size = 0x4, scoped, tag = 'scoped memory for tpu_custom_call.1']
    #allocation7 [shape = 'u8[65536]{0}', space=vmem, size = 0x10000, scoped, tag = 'output window, operand 0']
    %9 = vsyncpa [#allocation3], 0
    %s10 = scalar_lea.sflag [#allocation3], 1
    %11 = vsyncpa %s10, 0
    %12 = vsyncpa [#allocation6], 0
    %13 = vsyncpa [#allocation4], 0
    %s14 = scalar_lea.sflag [#allocation4], 1
    %15 = vsyncpa %s14, 0
    loop: start=0, step=1, limit=4
    $region2: #{tpu_custom_call.1} parent=1 // loop_pre_header
      _
    $region3: #{tpu_custom_call.1} parent=1 // loop_header
      %s17 = sphi 0, %s21
      %p18 = scmp.ge.s32.totalorder %s17, 4
      %s27 = sphi 0, %s29
      %s30 = sphi 0, %s27
      %s31 = sphi 0, %s30
      %s47 = sphi 0, %s31
      %s51 = sphi 0, %s51
      %s53 = sphi 0, %s51
      %s54 = sphi 0, %s53
      %s68 = sphi 0, %s54
      %s72 = sphi 0, %s72
      %s74 = sphi 0, %s72
      %s75 = sphi 0, %s74
      %s89 = sphi 0, %s75
      %s93 = sphi 0, %s93
      %s95 = sphi 0, %s93
      %s96 = sphi 0, %s95
      %s110 = sphi 0, %s96
      %s116 = sphi 0, %s118
      %s119 = sphi 0, %s116
      %s120 = sphi 0, %s119
      %s136 = sphi 0, %s120
    $region4: #{tpu_custom_call.1} parent=1 // loop_header_branch
      %20 = sbr.rel (%p18) target = $region8
    $region5: #{tpu_custom_call.1} parent=1 // loop_body
      %s22 = ssub.s32 %s17, 1
      %s23 = ssub.s32 %s17, 2
      %s24 = sadd.s32 %s17, 1
      %s25 = ssub.s32 %s17, %s24
      %p26 = scmp.eq.s32.totalorder %s25, 0
      %s28 = sadd.s32 %s27, 1
      %s29 = scalar_select %p26, %s27, %s28
      %p32 = pneg %p26
      %p33 = scmp.eq.s32.totalorder %s17, 1
      %p34 = por %p32, %p33
      %p35 = scmp.ne.s32.totalorder %s27, %s30
      %p36 = scmp.eq.s32.totalorder %s17, 0
      %p37 = por %p35, %p36
      %p38 = scmp.ne.s32.totalorder %s27, %s30
      %p39 = scmp.eq.s32.totalorder %s22, 1
      %p40 = por %p38, %p39
      %p41 = scmp.ne.s32.totalorder %s30, %s31
      %p42 = scmp.eq.s32.totalorder %s22, 0
      %p43 = por %p41, %p42
      %p44 = scmp.ne.s32.totalorder %s30, %s31
      %p45 = scmp.eq.s32.totalorder %s23, 1
      %p46 = por %p44, %p45
      %p48 = scmp.ne.s32.totalorder %s31, %s47
      %p49 = scmp.eq.s32.totalorder %s23, 0
      %p50 = por %p48, %p49
      %s52 = sadd.s32 %s51, 1
      %p55 = scmp.eq.s32.totalorder %s17, 1
      %p56 = scmp.ne.s32.totalorder %s51, %s53
      %p57 = scmp.eq.s32.totalorder %s17, 0
      %p58 = por %p56, %p57
      %p59 = scmp.ne.s32.totalorder %s51, %s53
      %p60 = scmp.eq.s32.totalorder %s22, 1
      %p61 = por %p59, %p60
      %p62 = scmp.ne.s32.totalorder %s53, %s54
      %p63 = scmp.eq.s32.totalorder %s22, 0
      %p64 = por %p62, %p63
      %p65 = scmp.ne.s32.totalorder %s53, %s54
      %p66 = scmp.eq.s32.totalorder %s23, 1
      %p67 = por %p65, %p66
      %p69 = scmp.ne.s32.totalorder %s54, %s68
      %p70 = scmp.eq.s32.totalorder %s23, 0
      %p71 = por %p69, %p70
      %s73 = sadd.s32 %s72, 1
      %p76 = scmp.eq.s32.totalorder %s17, 1
      %p77 = scmp.ne.s32.totalorder %s72, %s74
      %p78 = scmp.eq.s32.totalorder %s17, 0
      %p79 = por %p77, %p78
      %p80 = scmp.ne.s32.totalorder %s72, %s74
      %p81 = scmp.eq.s32.totalorder %s22, 1
      %p82 = por %p80, %p81
      %p83 = scmp.ne.s32.totalorder %s74, %s75
      %p84 = scmp.eq.s32.totalorder %s22, 0
      %p85 = por %p83, %p84
      %p86 = scmp.ne.s32.totalorder %s74, %s75
      %p87 = scmp.eq.s32.totalorder %s23, 1
      %p88 = por %p86, %p87
      %p90 = scmp.ne.s32.totalorder %s75, %s89
      %p91 = scmp.eq.s32.totalorder %s23, 0
      %p92 = por %p90, %p91
      %s94 = sadd.s32 %s93, 1
      %p97 = scmp.eq.s32.totalorder %s17, 1
      %p98 = scmp.ne.s32.totalorder %s93, %s95
      %p99 = scmp.eq.s32.totalorder %s17, 0
      %p100 = por %p98, %p99
      %p101 = scmp.ne.s32.totalorder %s93, %s95
      %p102 = scmp.eq.s32.totalorder %s22, 1
      %p103 = por %p101, %p102
      %p104 = scmp.ne.s32.totalorder %s95, %s96
      %p105 = scmp.eq.s32.totalorder %s22, 0
      %p106 = por %p104, %p105
      %p107 = scmp.ne.s32.totalorder %s95, %s96
      %p108 = scmp.eq.s32.totalorder %s23, 1
      %p109 = por %p107, %p108
      %p111 = scmp.ne.s32.totalorder %s96, %s110
      %p112 = scmp.eq.s32.totalorder %s23, 0
      %p113 = por %p111, %p112
      %s114 = ssub.s32 %s17, %s24
      %p115 = scmp.eq.s32.totalorder %s114, 0
      %s117 = sadd.s32 %s116, 1
      %s118 = scalar_select %p115, %s116, %s117
      %p121 = pneg %p115
      %p122 = scmp.eq.s32.totalorder %s17, 1
      %p123 = por %p121, %p122
      %p124 = scmp.ne.s32.totalorder %s116, %s119
      %p125 = scmp.eq.s32.totalorder %s17, 0
      %p126 = por %p124, %p125
      %p127 = scmp.ne.s32.totalorder %s116, %s119
      %p128 = scmp.eq.s32.totalorder %s22, 1
      %p129 = por %p127, %p128
      %p130 = scmp.ne.s32.totalorder %s119, %s120
      %p131 = scmp.eq.s32.totalorder %s22, 0
      %p132 = por %p130, %p131
      %p133 = scmp.ne.s32.totalorder %s119, %s120
      %p134 = scmp.eq.s32.totalorder %s23, 1
      %p135 = por %p133, %p134
      %p137 = scmp.ne.s32.totalorder %s120, %s136
      %p138 = scmp.eq.s32.totalorder %s23, 0
      %p139 = por %p137, %p138
      %p140 = scmp.le.s32.totalorder 1, %s17
      %p141 = scmp.lt.s32.totalorder %s17, 3
      %p142 = pnand %p140, %p141
      %p143 = pneg %p142
      // Predicated region
      $region9: #{tpu_custom_call.1} parent=5 // pred_check
        _
      $region10: #{tpu_custom_call.1} parent=5 // pred_check_branch
        %145 = sbr.rel (%p142) target = $region12
      $region11: #{tpu_custom_call.1} parent=5 // pred_region
        %s146 = ssub.s32 %s17, 1
        // Predicated region
        $region13: #{tpu_custom_call.1} parent=11 // pred_check
          %p147 = pneg %p64
        $region14: #{tpu_custom_call.1} parent=11 // pred_check_branch
          %149 = sbr.rel (%p147) target = $region16
        $region15: #{tpu_custom_call.1} parent=11 // pred_region
          _
        $region16: #{tpu_custom_call.1} parent=11 // pred_fallthru
          _
        // Predicated region
        $region17: #{tpu_custom_call.1} parent=11 // pred_check
          %p150 = pneg %p85
        $region18: #{tpu_custom_call.1} parent=11 // pred_check_branch
          %152 = sbr.rel (%p150) target = $region20
        $region19: #{tpu_custom_call.1} parent=11 // pred_region
          _
        $region20: #{tpu_custom_call.1} parent=11 // pred_fallthru
          _
        // Predicated region
        $region21: #{tpu_custom_call.1} parent=11 // pred_check
          %p153 = pneg %p106
        $region22: #{tpu_custom_call.1} parent=11 // pred_check_branch
          %155 = sbr.rel (%p153) target = $region24
        $region23: #{tpu_custom_call.1} parent=11 // pred_region
          %s157 = ssub.s32 2048, 2048
          %158 = vsyncadd [#allocation6], %s157
          %s159 = sshll.u32 [#allocation5], 4
          %s160 = int_to_ptr.vmem [resolvable:$true] %s159
          %165 = dma.hbm_to_vmem [thread:$0]  %s3, 2048, %s160, [#allocation6], 128, 128, 8
        $region24: #{tpu_custom_call.1} parent=11 // pred_fallthru
          _
      $region12: #{tpu_custom_call.1} parent=5 // pred_fallthru
        _
      %p166 = scmp.lt.s32.totalorder %s17, 2
      // Predicated region
      $region25: #{tpu_custom_call.1} parent=5 // pred_check
        %p167 = pneg %p166
      $region26: #{tpu_custom_call.1} parent=5 // pred_check_branch
        %169 = sbr.rel (%p167) target = $region28
      $region27: #{tpu_custom_call.1} parent=5 // pred_region
        // Predicated region
        $region29: #{tpu_custom_call.1} parent=27 // pred_check
          %p170 = pneg %p37
        $region30: #{tpu_custom_call.1} parent=27 // pred_check_branch
          %172 = sbr.rel (%p170) target = $region32
        $region31: #{tpu_custom_call.1} parent=27 // pred_region
          %s173 = sand.u32 %s27, 1
          %s174 = scalar_lea.sflag [#allocation3], %s173
          %s175 = sand.u32 %s27, 1
          %s176 = smul.addr %s175, 64
          %s177 = scalar_lea.vmem [#allocation2], %s176
          %s178 = smul.u32 8, %s17
          %s180 = ssub.s32 1024, 1024
          %181 = vsyncadd %s174, %s180
          %s182 = smul.addr %s178, 128
          %s183 = scalar_lea.hbm %s0, %s182
          %s184 = sshll.u32 %s177, 4
          %s185 = int_to_ptr.vmem [resolvable:$true] %s184
          %190 = dma.hbm_to_vmem [thread:$0]  %s183, 1024, %s185, %s174, 128, 128, 8
        $region32: #{tpu_custom_call.1} parent=27 // pred_fallthru
          _
      $region28: #{tpu_custom_call.1} parent=5 // pred_fallthru
        _
      %p191 = scmp.le.s32.totalorder 1, %s17
      %p192 = scmp.lt.s32.totalorder %s17, 3
      %p193 = pnand %p191, %p192
      %p194 = pneg %p193
      // Predicated region
      $region33: #{tpu_custom_call.1} parent=5 // pred_check
        _
      $region34: #{tpu_custom_call.1} parent=5 // pred_check_branch
        %196 = sbr.rel (%p193) target = $region36
      $region35: #{tpu_custom_call.1} parent=5 // pred_region
        %s197 = ssub.s32 %s17, 1
        %s198 = sand.u32 %s30, 1
        %s199 = scalar_lea.sflag [#allocation3], %s198
        %s200 = sand.u32 %s30, 1
        %s201 = smul.addr %s200, 64
        %s202 = scalar_lea.vmem [#allocation2], %s201
        // Predicated region
        $region37: #{tpu_custom_call.1} parent=35 // pred_check
          %p203 = pneg %p43
        $region38: #{tpu_custom_call.1} parent=35 // pred_check_branch
          %205 = sbr.rel (%p203) target = $region40
        $region39: #{tpu_custom_call.1} parent=35 // pred_region
          %206 = dma.done %s199, 1024
        $region40: #{tpu_custom_call.1} parent=35 // pred_fallthru
          _
        // Predicated region
        $region41: #{tpu_custom_call.1} parent=35 // pred_check
          %p207 = pneg %p106
        $region42: #{tpu_custom_call.1} parent=35 // pred_check_branch
          %209 = sbr.rel (%p207) target = $region44
        $region43: #{tpu_custom_call.1} parent=35 // pred_region
          %210 = dma.done [#allocation6], 2048
        $region44: #{tpu_custom_call.1} parent=35 // pred_fallthru
          _
        %s211 = sand.u32 %s30, 1
        %s212 = scalar_lea.sflag [#allocation3], %s211
        %s213 = sand.u32 %s30, 1
        %s214 = smul.addr %s213, 64
        %s215 = scalar_lea.vmem [#allocation2], %s214
        %p216 = pneg %p43
        %p217 = pneg %p40
        %p218 = pneg %p64
        %p219 = pneg %p61
        %p220 = pneg %p85
        %p221 = pneg %p82
        %p222 = pneg %p106
        %p223 = pneg %p103
        %p224 = pneg %p132
        %p225 = pneg %p129
        %s226 = sand.u32 %s119, 1
        %s227 = scalar_lea.sflag [#allocation4], %s226
        %s228 = sand.u32 %s119, 1
        %s229 = smul.addr %s228, 64
        %s230 = scalar_lea.vmem [#allocation7], %s229
        %s231 = smul.u32 8, %s22
        %s232 = smul.u32 8, %s22
        %v233 = vld [vmem:[%s202] sm:$0xff]
        %v234 = vld [vmem:[%s202 + $0x8] sm:$0xff]
        %v235 = vld [vmem:[%s202 + $0x10] sm:$0xff]
        %v236 = vld [vmem:[%s202 + $0x18] sm:$0xff]
        %v237 = vld [vmem:[%s202 + $0x20] sm:$0xff]
        %v238 = vld [vmem:[%s202 + $0x28] sm:$0xff]
        %v239 = vld [vmem:[%s202 + $0x30] sm:$0xff]
        %v240 = vld [vmem:[%s202 + $0x38] sm:$0xff]
        %v241 = vld [vmem:[#allocation5] sm:$0xff]
        %v242 = vld [vmem:[#allocation5 + $0x8] sm:$0xff]
        %v243 = vld [vmem:[#allocation5 + $0x10] sm:$0xff]
        %v244 = vld [vmem:[#allocation5 + $0x18] sm:$0xff]
        %v245 = vld [vmem:[#allocation5 + $0x20] sm:$0xff]
        %v246 = vld [vmem:[#allocation5 + $0x28] sm:$0xff]
        %v247 = vld [vmem:[#allocation5 + $0x30] sm:$0xff]
        %v248 = vld [vmem:[#allocation5 + $0x38] sm:$0xff]
        %v249 = vld [vmem:[#allocation5 + $0x40] sm:$0xff]
        %v250 = vld [vmem:[#allocation5 + $0x48] sm:$0xff]
        %v251 = vld [vmem:[#allocation5 + $0x50] sm:$0xff]
        %v252 = vld [vmem:[#allocation5 + $0x58] sm:$0xff]
        %v253 = vld [vmem:[#allocation5 + $0x60] sm:$0xff]
        %v254 = vld [vmem:[#allocation5 + $0x68] sm:$0xff]
        %v255 = vld [vmem:[#allocation5 + $0x70] sm:$0xff]
        %v256 = vld [vmem:[#allocation5 + $0x78] sm:$0xff]
        %257 = vmatprep.subr.mxu0 0.0
        %258 = vmatpush1.msra.mxu0 %v256
        %259 = vmatprep.subr.mxu0 0.0
        %260 = vmatpush1.msra.mxu0 %v255
        %261 = vmatprep.subr.mxu0 0.0
        %262 = vmatpush1.msra.mxu0 %v254
        %263 = vmatprep.subr.mxu0 0.0
        %264 = vmatpush1.msra.mxu0 %v253
        %265 = vmatprep.subr.mxu0 0.0
        %266 = vmatpush1.msra.mxu0 %v252
        %267 = vmatprep.subr.mxu0 0.0
        %268 = vmatpush1.msra.mxu0 %v251
        %269 = vmatprep.subr.mxu0 0.0
        %270 = vmatpush1.msra.mxu0 %v250
        %271 = vmatprep.subr.mxu0 0.0
        %272 = vmatpush1.msra.mxu0 %v249
        %273 = vmatprep.subr.mxu0 0.0
        %274 = vmatpush1.msra.mxu0 %v248
        %275 = vmatprep.subr.mxu0 0.0
        %276 = vmatpush1.msra.mxu0 %v247
        %277 = vmatprep.subr.mxu0 0.0
        %278 = vmatpush1.msra.mxu0 %v246
        %279 = vmatprep.subr.mxu0 0.0
        %280 = vmatpush1.msra.mxu0 %v245
        %281 = vmatprep.subr.mxu0 0.0
        %282 = vmatpush1.msra.mxu0 %v244
        %283 = vmatprep.subr.mxu0 0.0
        %284 = vmatpush1.msra.mxu0 %v243
        %285 = vmatprep.subr.mxu0 0.0
        %286 = vmatpush1.msra.mxu0 %v242
        %287 = vmatprep.subr.mxu0 0.0
        %288 = vmatpush1.msra.mxu0 %v241
        %289 = vmatprep.subr.mxu0 0.0
        %290 = vmatpush2.msra.mxu0 0.0
        %291 = vmatprep.subr.mxu0 0.0
        %292 = vmatpush2.msra.mxu0 0.0
        %293 = vmatprep.subr.mxu0 0.0
        %294 = vmatpush2.msra.mxu0 0.0
        %295 = vmatprep.subr.mxu0 0.0
        %296 = vmatpush2.msra.mxu0 0.0
        %297 = vmatprep.subr.mxu0 0.0
        %298 = vmatpush2.msra.mxu0 0.0
        %299 = vmatprep.subr.mxu0 0.0
        %300 = vmatpush2.msra.mxu0 0.0
        %301 = vmatprep.subr.mxu0 0.0
        %302 = vmatpush2.msra.mxu0 0.0
        %303 = vmatprep.subr.mxu0 0.0
        %304 = vmatpush2.msra.mxu0 0.0
        %305 = vmatprep.subr.mxu0 0.0
        %306 = vmatpush2.msra.mxu0 0.0
        %307 = vmatprep.subr.mxu0 0.0
        %308 = vmatpush2.msra.mxu0 0.0
        %309 = vmatprep.subr.mxu0 0.0
        %310 = vmatpush2.msra.mxu0 0.0
        %311 = vmatprep.subr.mxu0 0.0
        %312 = vmatpush2.msra.mxu0 0.0
        %313 = vmatprep.subr.mxu0 0.0
        %314 = vmatpush2.msra.mxu0 0.0
        %315 = vmatprep.subr.mxu0 0.0
        %316 = vmatpush2.msra.mxu0 0.0
        %317 = vmatprep.subr.mxu0 0.0
        %318 = vmatpush2.msra.mxu0 0.0
        %319 = vmatprep.subr.mxu0 0.0
        %320 = vmatpush2.msra.mxu0 0.0
        %321 = vmatprep.mubr.f32.mxu0 0.0
        %322 = vmatmul.mubr.f32.gmra.mxu0 %v233
        %v323 = vpop.f32.mrf.mxu0
        %v324 = vadd.f32 0.0, %v323
        %v325 = vpop.f32.mrf.mxu0
        %326 = vmatprep.mubr.f32.mxu0 0.0
        %327 = vmatmul.mubr.f32.gmra.mxu0 %v234
        %v328 = vpop.f32.mrf.mxu0
        %v329 = vadd.f32 0.0, %v328
        %v330 = vpop.f32.mrf.mxu0
        %331 = vmatprep.mubr.f32.mxu0 0.0
        %332 = vmatmul.mubr.f32.gmra.mxu0 %v235
        %v333 = vpop.f32.mrf.mxu0
        %v334 = vadd.f32 0.0, %v333
        %v335 = vpop.f32.mrf.mxu0
        %336 = vmatprep.mubr.f32.mxu0 0.0
        %337 = vmatmul.mubr.f32.gmra.mxu0 %v236
        %v338 = vpop.f32.mrf.mxu0
        %v339 = vadd.f32 0.0, %v338
        %v340 = vpop.f32.mrf.mxu0
        %341 = vmatprep.mubr.f32.mxu0 0.0
        %342 = vmatmul.mubr.f32.gmra.mxu0 %v237
        %v343 = vpop.f32.mrf.mxu0
        %v344 = vadd.f32 0.0, %v343
        %v345 = vpop.f32.mrf.mxu0
        %346 = vmatprep.mubr.f32.mxu0 0.0
        %347 = vmatmul.mubr.f32.gmra.mxu0 %v238
        %v348 = vpop.f32.mrf.mxu0
        %v349 = vadd.f32 0.0, %v348
        %v350 = vpop.f32.mrf.mxu0
        %351 = vmatprep.mubr.f32.mxu0 0.0
        %352 = vmatmul.mubr.f32.gmra.mxu0 %v239
        %v353 = vpop.f32.mrf.mxu0
        %v354 = vadd.f32 0.0, %v353
        %v355 = vpop.f32.mrf.mxu0
        %356 = vmatprep.mubr.f32.mxu0 0.0
        %357 = vmatmul.mubr.f32.gmra.mxu0 %v240
        %v358 = vpop.f32.mrf.mxu0
        %v359 = vadd.f32 0.0, %v358
        %v360 = vpop.f32.mrf.mxu0
        %361 = vdwg.mxu0
        %v362 = vmul.f32 %v324, 0.03125
        %v363 = vmul.f32 %v329, 0.03125
        %v364 = vmul.f32 %v334, 0.03125
        %v365 = vmul.f32 %v339, 0.03125
        %v366 = vmul.f32 %v344, 0.03125
        %v367 = vmul.f32 %v349, 0.03125
        %v368 = vmul.f32 %v354, 0.03125
        %v369 = vmul.f32 %v359, 0.03125
        %v370 = vsub.f32 %v233, %v362
        %v371 = vsub.f32 %v234, %v363
        %v372 = vsub.f32 %v235, %v364
        %v373 = vsub.f32 %v236, %v365
        %v374 = vsub.f32 %v237, %v366
        %v375 = vsub.f32 %v238, %v367
        %v376 = vsub.f32 %v239, %v368
        %v377 = vsub.f32 %v240, %v369
        %v378 = vmul.f32 %v370, %v370
        %v379 = vmul.f32 %v371, %v371
        %v380 = vmul.f32 %v372, %v372
        %v381 = vmul.f32 %v373, %v373
        %v382 = vmul.f32 %v374, %v374
        %v383 = vmul.f32 %v375, %v375
        %v384 = vmul.f32 %v376, %v376
        %v385 = vmul.f32 %v377, %v377
        %386 = vmatprep.subr.mxu0 0.0
        %387 = vmatpush1.msra.mxu0 %v256
        %388 = vmatprep.subr.mxu0 0.0
        %389 = vmatpush1.msra.mxu0 %v255
        %390 = vmatprep.subr.mxu0 0.0
        %391 = vmatpush1.msra.mxu0 %v254
        %392 = vmatprep.subr.mxu0 0.0
        %393 = vmatpush1.msra.mxu0 %v253
        %394 = vmatprep.subr.mxu0 0.0
        %395 = vmatpush1.msra.mxu0 %v252
        %396 = vmatprep.subr.mxu0 0.0
        %397 = vmatpush1.msra.mxu0 %v251
        %398 = vmatprep.subr.mxu0 0.0
        %399 = vmatpush1.msra.mxu0 %v250
        %400 = vmatprep.subr.mxu0 0.0
        %401 = vmatpush1.msra.mxu0 %v249
        %402 = vmatprep.subr.mxu0 0.0
        %403 = vmatpush1.msra.mxu0 %v248
        %404 = vmatprep.subr.mxu0 0.0
        %405 = vmatpush1.msra.mxu0 %v247
        %406 = vmatprep.subr.mxu0 0.0
        %407 = vmatpush1.msra.mxu0 %v246
        %408 = vmatprep.subr.mxu0 0.0
        %409 = vmatpush1.msra.mxu0 %v245
        %410 = vmatprep.subr.mxu0 0.0
        %411 = vmatpush1.msra.mxu0 %v244
        %412 = vmatprep.subr.mxu0 0.0
        %413 = vmatpush1.msra.mxu0 %v243
        %414 = vmatprep.subr.mxu0 0.0
        %415 = vmatpush1.msra.mxu0 %v242
        %416 = vmatprep.subr.mxu0 0.0
        %417 = vmatpush1.msra.mxu0 %v241
        %418 = vmatprep.subr.mxu0 0.0
        %419 = vmatpush2.msra.mxu0 0.0
        %420 = vmatprep.subr.mxu0 0.0
        %421 = vmatpush2.msra.mxu0 0.0
        %422 = vmatprep.subr.mxu0 0.0
        %423 = vmatpush2.msra.mxu0 0.0
        %424 = vmatprep.subr.mxu0 0.0
        %425 = vmatpush2.msra.mxu0 0.0
        %426 = vmatprep.subr.mxu0 0.0
        %427 = vmatpush2.msra.mxu0 0.0
        %428 = vmatprep.subr.mxu0 0.0
        %429 = vmatpush2.msra.mxu0 0.0
        %430 = vmatprep.subr.mxu0 0.0
        %431 = vmatpush2.msra.mxu0 0.0
        %432 = vmatprep.subr.mxu0 0.0
        %433 = vmatpush2.msra.mxu0 0.0
        %434 = vmatprep.subr.mxu0 0.0
        %435 = vmatpush2.msra.mxu0 0.0
        %436 = vmatprep.subr.mxu0 0.0
        %437 = vmatpush2.msra.mxu0 0.0
        %438 = vmatprep.subr.mxu0 0.0
        %439 = vmatpush2.msra.mxu0 0.0
        %440 = vmatprep.subr.mxu0 0.0
        %441 = vmatpush2.msra.mxu0 0.0
        %442 = vmatprep.subr.mxu0 0.0
        %443 = vmatpush2.msra.mxu0 0.0
        %444 = vmatprep.subr.mxu0 0.0
        %445 = vmatpush2.msra.mxu0 0.0
        %446 = vmatprep.subr.mxu0 0.0
        %447 = vmatpush2.msra.mxu0 0.0
        %448 = vmatprep.subr.mxu0 0.0
        %449 = vmatpush2.msra.mxu0 0.0
        %450 = vmatprep.mubr.f32.mxu0 0.0
        %451 = vmatmul.mubr.f32.gmra.mxu0 %v378
        %v452 = vpop.f32.mrf.mxu0
        %v453 = vadd.f32 0.0, %v452
        %v454 = vpop.f32.mrf.mxu0
        %455 = vmatprep.mubr.f32.mxu0 0.0
        %456 = vmatmul.mubr.f32.gmra.mxu0 %v379
        %v457 = vpop.f32.mrf.mxu0
        %v458 = vadd.f32 0.0, %v457
        %v459 = vpop.f32.mrf.mxu0
        %460 = vmatprep.mubr.f32.mxu0 0.0
        %461 = vmatmul.mubr.f32.gmra.mxu0 %v380
        %v462 = vpop.f32.mrf.mxu0
        %v463 = vadd.f32 0.0, %v462
        %v464 = vpop.f32.mrf.mxu0
        %465 = vmatprep.mubr.f32.mxu0 0.0
        %466 = vmatmul.mubr.f32.gmra.mxu0 %v381
        %v467 = vpop.f32.mrf.mxu0
        %v468 = vadd.f32 0.0, %v467
        %v469 = vpop.f32.mrf.mxu0
        %470 = vmatprep.mubr.f32.mxu0 0.0
        %471 = vmatmul.mubr.f32.gmra.mxu0 %v382
        %v472 = vpop.f32.mrf.mxu0
        %v473 = vadd.f32 0.0, %v472
        %v474 = vpop.f32.mrf.mxu0
        %475 = vmatprep.mubr.f32.mxu0 0.0
        %476 = vmatmul.mubr.f32.gmra.mxu0 %v383
        %v477 = vpop.f32.mrf.mxu0
        %v478 = vadd.f32 0.0, %v477
        %v479 = vpop.f32.mrf.mxu0
        %480 = vmatprep.mubr.f32.mxu0 0.0
        %481 = vmatmul.mubr.f32.gmra.mxu0 %v384
        %v482 = vpop.f32.mrf.mxu0
        %v483 = vadd.f32 0.0, %v482
        %v484 = vpop.f32.mrf.mxu0
        %485 = vmatprep.mubr.f32.mxu0 0.0
        %486 = vmatmul.mubr.f32.gmra.mxu0 %v385
        %v487 = vpop.f32.mrf.mxu0
        %v488 = vadd.f32 0.0, %v487
        %v489 = vpop.f32.mrf.mxu0
        %490 = vdwg.mxu0
        %v491 = vmul.f32 %v453, 0.03125
        %v492 = vmul.f32 %v458, 0.03125
        %v493 = vmul.f32 %v463, 0.03125
        %v494 = vmul.f32 %v468, 0.03125
        %v495 = vmul.f32 %v473, 0.03125
        %v496 = vmul.f32 %v478, 0.03125
        %v497 = vmul.f32 %v483, 0.03125
        %v498 = vmul.f32 %v488, 0.03125
        %v499 = vadd.f32 %v491, 1e-06
        %v500 = vadd.f32 %v492, 1e-06
        %v501 = vadd.f32 %v493, 1e-06
        %v502 = vadd.f32 %v494, 1e-06
        %v503 = vadd.f32 %v495, 1e-06
        %v504 = vadd.f32 %v496, 1e-06
        %v505 = vadd.f32 %v497, 1e-06
        %v506 = vadd.f32 %v498, 1e-06
        %v507 = vrsqrt.pop %v499
        %v508 = vrsqrt.pop %v500
        %v509 = vrsqrt.pop %v501
        %v510 = vrsqrt.pop %v502
        %v511 = vrsqrt.pop %v503
        %v512 = vrsqrt.pop %v504
        %v513 = vrsqrt.pop %v505
        %v514 = vrsqrt.pop %v506
        %v515 = vld [vmem:[%s1] sm:$0x1]
        %v516 = vld [vmem:[%s2] sm:$0x1]
        %v517 = vmul.f32 %v370, %v507
        %v518 = vmul.f32 %v371, %v508
        %v519 = vmul.f32 %v372, %v509
        %v520 = vmul.f32 %v373, %v510
        %v521 = vmul.f32 %v374, %v511
        %v522 = vmul.f32 %v375, %v512
        %v523 = vmul.f32 %v376, %v513
        %v524 = vmul.f32 %v377, %v514
        %v526 = vlaneseq
        %v527 = vshrl.u32 %v526, 7
        %v528 = vsub.s32 0, %v527
        %v529 = vrot.slane %v515, %v528
        %v531 = vmul.f32 %v517, %v529
        %v532 = vmul.f32 %v518, %v529
        %v533 = vmul.f32 %v519, %v529
        %v534 = vmul.f32 %v520, %v529
        %v535 = vmul.f32 %v521, %v529
        %v536 = vmul.f32 %v522, %v529
        %v537 = vmul.f32 %v523, %v529
        %v538 = vmul.f32 %v524, %v529
        %v540 = vlaneseq
        %v541 = vshrl.u32 %v540, 7
        %v542 = vsub.s32 0, %v541
        %v543 = vrot.slane %v516, %v542
        %v545 = vadd.f32 %v531, %v543
        %v546 = vadd.f32 %v532, %v543
        %v547 = vadd.f32 %v533, %v543
        %v548 = vadd.f32 %v534, %v543
        %v549 = vadd.f32 %v535, %v543
        %v550 = vadd.f32 %v536, %v543
        %v551 = vadd.f32 %v537, %v543
        %v552 = vadd.f32 %v538, %v543
        %553 = vst [vmem:[%s230] sm:$0xff] %v545
        %554 = vst [vmem:[%s230 + $0x8] sm:$0xff] %v546
        %555 = vst [vmem:[%s230 + $0x10] sm:$0xff] %v547
        %556 = vst [vmem:[%s230 + $0x18] sm:$0xff] %v548
        %557 = vst [vmem:[%s230 + $0x20] sm:$0xff] %v549
        %558 = vst [vmem:[%s230 + $0x28] sm:$0xff] %v550
        %559 = vst [vmem:[%s230 + $0x30] sm:$0xff] %v551
        %560 = vst [vmem:[%s230 + $0x38] sm:$0xff] %v552
        %s561 = sand.u32 %s119, 1
        %s562 = scalar_lea.sflag [#allocation4], %s561
        %s563 = sand.u32 %s119, 1
        %s564 = smul.addr %s563, 64
        %s565 = scalar_lea.vmem [#allocation7], %s564
        // Predicated region
        $region45: #{tpu_custom_call.1} parent=35 // pred_check
          %p566 = pneg %p129
        $region46: #{tpu_custom_call.1} parent=35 // pred_check_branch
          %568 = sbr.rel (%p566) target = $region48
        $region47: #{tpu_custom_call.1} parent=35 // pred_region
          %s569 = smul.u32 8, %s22
          %s571 = ssub.s32 1024, 1024
          %572 = vsyncadd %s562, %s571
          %s573 = smul.addr %s569, 128
          %s574 = scalar_lea.hbm %s4, %s573
          %s575 = sshll.u32 %s565, 4
          %s576 = int_to_ptr.vmem [resolvable:$true] %s575
          %581 = dma.vmem_to_hbm [thread:$0]  %s576, 1024, %s574, %s562, 128, 128, 8
        $region48: #{tpu_custom_call.1} parent=35 // pred_fallthru
          _
      $region36: #{tpu_custom_call.1} parent=5 // pred_fallthru
        _
      %p582 = scmp.le.s32.totalorder 2, %s17
      // Predicated region
      $region49: #{tpu_custom_call.1} parent=5 // pred_check
        %p583 = pneg %p582
      $region50: #{tpu_custom_call.1} parent=5 // pred_check_branch
        %585 = sbr.rel (%p583) target = $region52
      $region51: #{tpu_custom_call.1} parent=5 // pred_region
        %s586 = ssub.s32 %s17, 2
        // Predicated region
        $region53: #{tpu_custom_call.1} parent=51 // pred_check
          %p587 = pneg %p135
        $region54: #{tpu_custom_call.1} parent=51 // pred_check_branch
          %589 = sbr.rel (%p587) target = $region56
        $region55: #{tpu_custom_call.1} parent=51 // pred_region
          %s590 = sand.u32 %s120, 1
          %s591 = scalar_lea.sflag [#allocation4], %s590
          %s592 = sand.u32 %s120, 1
          %s593 = smul.addr %s592, 64
          %s594 = scalar_lea.vmem [#allocation7], %s593
          %595 = dma.done %s591, 1024
        $region56: #{tpu_custom_call.1} parent=51 // pred_fallthru
          _
      $region52: #{tpu_custom_call.1} parent=5 // pred_fallthru
        _
    $region6: #{tpu_custom_call.1} parent=1 // loop_footer
      %s21 = sadd.s32 1, %s17
    $region7: #{tpu_custom_call.1} parent=1 // loop_footer_branch
      %16 = sbr.rel target = $region3
    $region8: #{tpu_custom_call.1} parent=1 // loop_exit
      _
    %596 = vsyncpa [#allocation3], 1
    %s597 = scalar_lea.sflag [#allocation3], 1
    %598 = vsyncpa %s597, 1
    %599 = vsyncpa [#allocation6], 1
    %600 = vsyncpa [#allocation4], 1
    %s601 = scalar_lea.sflag [#allocation4], 1
    %602 = vsyncpa %s601, 1

</llo_original>
